<compile_context>
chip_gen: v7x
topology: tpu7x:2x2x1
jax: 0.10.0
libtpu: 0.0.40
codegen_flags: <defaults>
</compile_context>

<pallas_src>
import functools

import jax
import jax.numpy as jnp
from jax import lax
from jax.experimental import pallas as pl
from jax.experimental.pallas import tpu as pltpu


def _round_up(x, m):
    return -(-x // m) * m


def _vmem_budget_bytes():
    # Generation-aware VMEM budget (v5e/v6e: 128 MiB physical, v7x: 64 MiB/TC).
    try:
        cap = pltpu.get_tpu_info().vmem_capacity_bytes
    except Exception:
        cap = 64 * 1024 * 1024
    return int(cap) * 3 // 4


# --------------------------------------------------------------------------
# Path 1: small vocab -> one-hot matmul on the MXU (no serialized gather loop)
# --------------------------------------------------------------------------
def _onehot_embed_kernel(ids_ref, table_ref, out_ref, *, padding_idx):
    ids = ids_ref[...]                                      # (t, 1) int32
    t = ids.shape[0]
    v = table_ref.shape[0]
    iota = lax.broadcasted_iota(jnp.int32, (t, v), 1)       # (t, V)
    onehot = iota == ids                                    # row selector
    if padding_idx is not None:
        onehot = jnp.logical_and(onehot, ids != padding_idx)  # padding -> zero row
    onehot = onehot.astype(table_ref.dtype)
    out_ref[...] = jnp.dot(onehot, table_ref[...],
                           preferred_element_type=jnp.float32
                           ).astype(out_ref.dtype)


# --------------------------------------------------------------------------
# Path 2: table resident in VMEM -> grouped gather, coalesced (8, E) stores
# --------------------------------------------------------------------------
def _resident_gather_kernel(ids_ref, table_ref, mask_ref, out_ref, *,
                            block_tokens):
    base = pl.program_id(0) * block_tokens
    n_groups = block_tokens // 8

    def group(g, carry):
        t0 = pl.multiple_of(g * 8, 8)
        # 8 statically-unrolled dynamic row reads from the VMEM-resident table.
        rows = [table_ref[pl.ds(ids_ref[base + t0 + j], 1), :] for j in range(8)]
        grp = jnp.concatenate(rows, axis=0)                  # (8, E)
        # One vectorized padding-mask multiply + one coalesced (8, E) store.
        out_ref[pl.ds(t0, 8), :] = grp * mask_ref[pl.ds(t0, 8), :]
        return carry

    lax.fori_loop(0, n_groups, group, 0, unroll=(n_groups <= 8))


# --------------------------------------------------------------------------
# Path 3: large vocab -> table stays in HBM, per-row DMA gather (8 in flight)
# --------------------------------------------------------------------------
def _hbm_gather_kernel(ids_ref, table_ref, mask_ref, out_ref, stage_ref, sem,
                       *, block_tokens, n_inflight):
    base = pl.program_id(0) * block_tokens

    def issue(t):
        idx = ids_ref[base + t]
        pltpu.make_async_copy(table_ref.at[pl.ds(idx, 1), :],
                              stage_ref.at[pl.ds(t, 1), :],
                              sem.at[t % n_inflight]).start()

    def wait_for(t):
        # Shape-only descriptor; waits on the matching semaphore slot.
        pltpu.make_async_copy(table_ref.at[pl.ds(0, 1), :],
                              stage_ref.at[pl.ds(0, 1), :],
                              sem.at[t % n_inflight]).wait()

    @pl.loop(0, n_inflight)
    def _prime(t):
        issue(t)

    @pl.loop(n_inflight, block_tokens)
    def _steady(t):
        wait_for(t - n_inflight)
        issue(t)

    @pl.loop(block_tokens - n_inflight, block_tokens)
    def _drain(t):
        wait_for(t)

    # One vectorized padding-mask multiply over the whole staged tile.
    out_ref[...] = stage_ref[...] * mask_ref[...]


# --------------------------------------------------------------------------
# Wrapper: deepxml.modules.Embedding.forward (eval mode)
# --------------------------------------------------------------------------
def embedding_forward(ids, table, padding_idx=0, block_tokens=1024,
                      force_path=None):
    """Returns (emb_out, lengths, masks). Dropout(p=0.2) is identity in eval."""
    B, S = ids.shape
    V, E = table.shape
    dtype = table.dtype
    itemsize = jnp.dtype(dtype).itemsize

    # Lane-dense embedding dim: pad E to a multiple of 128 (sliced back below).
    E_pad = _round_up(E, 128)
    v_rows = _round_up(V, 8)

    # Token tiling: big blocks amortize the ~0.35 us per-grid-step overhead.
    n_tokens = B * S
    t = max(8, min(_round_up(block_tokens, 8), _round_up(n_tokens, 8)))
    num_blocks = pl.cdiv(n_tokens, t)
    padded_tokens = num_blocks * t

    flat_ids = ids.reshape(n_tokens).astype(jnp.int32)
    if padded_tokens != n_tokens:
        pad_val = padding_idx if padding_idx is not None else 0
        flat_ids = jnp.pad(flat_ids, (0, padded_tokens - n_tokens),
                           constant_values=pad_val)
    if padding_idx is not None:
        keep = flat_ids != padding_idx
    else:
        keep = jnp.ones((padded_tokens,), dtype=jnp.bool_)
    # Clamp ids so a bad value can never become an unchecked OOB slice / DMA.
    safe_ids = jnp.clip(flat_ids, 0, V - 1)
    mask_f = keep.astype(dtype).reshape(padded_tokens, 1)

    budget = _vmem_budget_bytes()
    table_bytes = v_rows * E_pad * itemsize
    tile_bytes = t * E_pad * itemsize
    resident_fits = table_bytes + 4 * tile_bytes <= budget

    if force_path is not None:
        path = force_path
    elif v_rows <= 512 and resident_fits:
        path = "onehot"
    elif resident_fits:
        path = "resident"
    else:
        path = "hbm"

    def _padded_table():
        if E_pad == E and v_rows == V:
            return table
        return jnp.pad(table, ((0, v_rows - V), (0, E_pad - E)))

    if path == "onehot":
        ids_col = flat_ids.reshape(padded_tokens, 1)  # out-of-range id -> zero row
        kernel = functools.partial(_onehot_embed_kernel, padding_idx=padding_idx)
        gathered = pl.pallas_call(
            kernel,
            out_shape=jax.ShapeDtypeStruct((padded_tokens, E_pad), dtype),
            grid_spec=pltpu.PrefetchScalarGridSpec(
                num_scalar_prefetch=0,
                grid=(num_blocks,),
                in_specs=[
                    pl.BlockSpec((t, 1), lambda i: (i, 0)),
                    # Whole table resident in VMEM, single-buffered (not pipelined).
                    pl.BlockSpec(memory_space=pltpu.MemorySpace.VMEM),
                ],
                out_specs=pl.BlockSpec((t, E_pad), lambda i: (i, 0)),
            ),
            compiler_params=pltpu.CompilerParams(
                # "parallel" lets the token-block axis shard across both TCs on v7x.
                dimension_semantics=("parallel",),
                vmem_limit_bytes=budget,
            ),
        )(ids_col, _padded_table())

    elif path == "resident":
        kernel = functools.partial(_resident_gather_kernel, block_tokens=t)
        gathered = pl.pallas_call(
            kernel,
            out_shape=jax.ShapeDtypeStruct((padded_tokens, E_pad), dtype),
            grid_spec=pltpu.PrefetchScalarGridSpec(
                num_scalar_prefetch=1,            # token ids live in SMEM
                grid=(num_blocks,),
                in_specs=[
                    pl.BlockSpec(memory_space=pltpu.MemorySpace.VMEM),
                    pl.BlockSpec((t, 1), lambda i, ids_sref: (i, 0)),
                ],
                out_specs=pl.BlockSpec((t, E_pad), lambda i, ids_sref: (i, 0)),
            ),
            compiler_params=pltpu.CompilerParams(
                dimension_semantics=("parallel",),
                vmem_limit_bytes=budget,
            ),
        )(safe_ids, _padded_table(), mask_f)

    else:  # "hbm": large-vocab row gather, table never copied into VMEM
        n_inflight = min(8, t)
        kernel = functools.partial(_hbm_gather_kernel, block_tokens=t,
                                   n_inflight=n_inflight)
        tp = table if E_pad == E else jnp.pad(table, ((0, 0), (0, E_pad - E)))
        gathered = pl.pallas_call(
            kernel,
            out_shape=jax.ShapeDtypeStruct((padded_tokens, E_pad), dtype),
            grid_spec=pltpu.PrefetchScalarGridSpec(
                num_scalar_prefetch=1,
                grid=(num_blocks,),
                in_specs=[
                    pl.BlockSpec(memory_space=pl.ANY),   # table stays in HBM
                    pl.BlockSpec((t, 1), lambda i, ids_sref: (i, 0)),
                ],
                out_specs=pl.BlockSpec((t, E_pad), lambda i, ids_sref: (i, 0)),
                scratch_shapes=[
                    pltpu.VMEM((t, E_pad), dtype),           # DMA staging tile
                    pltpu.SemaphoreType.DMA((n_inflight,)),  # in-flight row copies
                ],
            ),
            compiler_params=pltpu.CompilerParams(
                dimension_semantics=("arbitrary",),
                vmem_limit_bytes=budget,
            ),
        )(safe_ids, tp, mask_f)

    emb_out = gathered[:n_tokens, :E].reshape(B, S, E)

    # Dropout(p=0.2) in eval mode is the identity -> no-op here.
    if padding_idx is not None:
        masks = ids != padding_idx
    else:
        masks = jnp.ones_like(ids, dtype=jnp.bool_)
    lengths = masks.sum(axis=-1).astype(jnp.int32)
    # TODO(synk): PyTorch truncates emb_out/masks to lengths.max() (a
    # data-dependent output shape); returned untruncated since dynamic shapes
    # are not expressible in a static Pallas/XLA program.
    return emb_out, lengths, masks


if __name__ == "__main__":
    key = jax.random.PRNGKey(0)
    k_table, k_ids, k_table2 = jax.random.split(key, 3)

    padding_idx = 0
    B, S = 2, 8

    # Case 1: lane-aligned embedding dim (E = 128), small vocab (V = 32).
    V1, E1 = 32, 128
    table1 = jax.random.normal(k_table, (V1, E1), dtype=jnp.float32)
    table1 = table1.at[padding_idx].set(0.0)   # nn.Embedding(padding_idx=...) contract
    ids = jax.random.randint(k_ids, (B, S), 1, V1, dtype=jnp.int32)
    ids = ids.at[0, 6:].set(padding_idx)
    ids = ids.at[1, 4:].set(padding_idx)
    ref1 = jnp.take(table1, ids, axis=0)

    # Exercise all three code paths at small shape (block_tokens=8 -> 2 grid steps).
    for path in ("onehot", "resident", "hbm"):
        emb_out, lengths, masks = embedding_forward(
            ids, table1, padding_idx, block_tokens=8, force_path=path)
        jax.block_until_ready((emb_out, lengths, masks))
        assert emb_out.shape == (B, S, E1)
        assert jnp.allclose(emb_out, ref1, atol=1e-5), f"{path} gather mismatch"
        assert jnp.array_equal(lengths, jnp.array([6, 4], dtype=jnp.int32))
        assert jnp.array_equal(masks, ids != padding_idx)

    # Case 2: GloVe-style non-lane-aligned embedding dim (E = 300 -> padded to 384),
    # auto path selection, default block_tokens.
    V2, E2 = 48, 300
    table2 = jax.random.normal(k_table2, (V2, E2), dtype=jnp.float32)
    table2 = table2.at[padding_idx].set(0.0)
    ids2 = jax.random.randint(k_ids, (B, S), 1, V2, dtype=jnp.int32)
    ids2 = ids2.at[1, 5:].set(padding_idx)
    ref2 = jnp.take(table2, ids2, axis=0)
    emb_out2, lengths2, masks2 = embedding_forward(ids2, table2, padding_idx)
    jax.block_until_ready((emb_out2, lengths2, masks2))
    assert emb_out2.shape == (B, S, E2)
    assert jnp.allclose(emb_out2, ref2, atol=1e-5), "padded-E gather mismatch"
    assert jnp.array_equal(masks2, ids2 != padding_idx)

    print("KERNEL_OK")
</pallas_src>

<mosaic_0001>
module attributes {stable_mosaic.version = 11 : i64} {
  func.func @_onehot_embed_kernel(%arg0: i32, %arg1: memref<8x1xi32, #tpu.memory_space<vmem>>, %arg2: memref<32x128xf32, #tpu.memory_space<vmem>>, %arg3: memref<8x128xf32, #tpu.memory_space<vmem>>) attributes {dimension_semantics = [#tpu.dimension_semantics<parallel>], iteration_bounds = array<i64: 2>, scalar_prefetch = 0 : i64, scratch_operands = 0 : i64, tpu.core_type = #tpu.core_type<tc>, window_params = [{transform_indices = @transform_0, window_bounds = array<i64: 8, 1>}, {pipeline_mode = #tpu.pipeline_mode<synchronous>, transform_indices = @transform_1, window_bounds = array<i64: 32, 128>}, {transform_indices = @transform_2, window_bounds = array<i64: 8, 128>}]} {
    %c0 = arith.constant 0 : index
    %c0_0 = arith.constant 0 : index
    %0 = vector.load %arg1[%c0, %c0_0] : memref<8x1xi32, #tpu.memory_space<vmem>>, vector<8x1xi32>
    %1 = tpu.iota {dimensions = array<i32: 1>} : vector<8x32xi32>
    %2 = vector.broadcast %0 : vector<8x1xi32> to vector<8x32xi32>
    %3 = arith.cmpi eq, %1, %2 : vector<8x32xi32>
    %c0_i32 = arith.constant 0 : i32
    %4 = vector.broadcast %c0_i32 : i32 to vector<8x1xi32>
    %5 = arith.cmpi ne, %0, %4 : vector<8x1xi32>
    %6 = vector.broadcast %5 : vector<8x1xi1> to vector<8x32xi1>
    %7 = arith.andi %3, %6 : vector<8x32xi1>
    %8 = arith.extui %7 : vector<8x32xi1> to vector<8x32xi32>
    %9 = arith.sitofp %8 : vector<8x32xi32> to vector<8x32xf32>
    %c0_1 = arith.constant 0 : index
    %c0_2 = arith.constant 0 : index
    %10 = vector.load %arg2[%c0_1, %c0_2] : memref<32x128xf32, #tpu.memory_space<vmem>>, vector<32x128xf32>
    %cst = arith.constant dense<0.000000e+00> : vector<8x128xf32>
    %11 = tpu.matmul %9, %10, %cst {dimension_numbers = #tpu.dot_dimension_numbers<[1], [0], [0], [1], [0, 0, 1, 1], [], []>} : vector<8x32xf32>, vector<32x128xf32>, vector<8x128xf32> -> vector<8x128xf32>
    %c0_3 = arith.constant 0 : index
    %c0_4 = arith.constant 0 : index
    %12 = vector.load %arg3[%c0_3, %c0_4] : memref<8x128xf32, #tpu.memory_space<vmem>>, vector<8x128xf32>
    tpu.vector_store %arg3[%c0_3, %c0_4], %11 {strides = array<i32>} : memref<8x128xf32, #tpu.memory_space<vmem>>, vector<8x128xf32>,
    return
  }
  func.func @transform_0(%arg0: i32) -> (i32, i32) {
    %c0_i32 = arith.constant 0 : i32
    %c0_i32_0 = arith.constant 0 : i32
    return %arg0, %c0_i32 : i32, i32
  }
  func.func @transform_1(%arg0: i32) -> (i32, i32) {
    %c0_i32 = arith.constant 0 : i32
    %c0_i32_0 = arith.constant 0 : i32
    %c0_i32_1 = arith.constant 0 : i32
    return %c0_i32, %c0_i32_0 : i32, i32
  }
  func.func @transform_2(%arg0: i32) -> (i32, i32) {
    %c0_i32 = arith.constant 0 : i32
    %c0_i32_0 = arith.constant 0 : i32
    return %arg0, %c0_i32 : i32, i32
  }
}

</mosaic_0001>

<llo_original>
// kernel: tpu_custom_call.1
$region0: #{tpu_custom_call.1}
  #allocation0 [shape = 'u32[]', space=smem, size = 0x4, offset = 0x4, fixed_abs, tag = 'smem constant byte address 0x4 - core index']
  #allocation1 [shape = 'u32[144,128]{1,0:T(1,128)}', space=vmem, size = 0x12000, scoped, tag = 'internal scratch']
  %s0 = inlined_call_operand.vmem [shape: s32[16,1], index: 0, kind: input, shape index: {}]
  %s1 = inlined_call_operand.hbm [shape: f32[32,128], index: 1, kind: input, shape index: {}]
  %s2 = inlined_call_operand.hbm [shape: f32[16,128], index: 2, kind: output, shape index: {}]
  %s3 = sld [smem:[#allocation0]]
  $region45: #{tpu_custom_call.1} parent=0
    _
  %s5 = ssub.s32 1, %s3
  %s6 = scalar_select 0, %s5, %s3
  $region1: #{tpu_custom_call.1} parent=0
    #allocation2 [shape = 'u8[16384]{0}', space=vmem, size = 0x4000, scoped, tag = 'input window, operand 1, single buffered']
    #allocation3 [shape = 's32[2]{0}', space=sflag, size = 0x8, scoped, tag = 'scoped memory for tpu_custom_call.1']
    #allocation4 [shape = 's32[2]{0}', space=sflag, size = 0x8, scoped, tag = 'scoped memory for tpu_custom_call.1']
    #allocation5 [shape = 'u8[8192]{0}', space=vmem, size = 0x2000, scoped, tag = 'output window, operand 0']
    %7 = vsyncpa [#allocation3], 0
    %8 = vsyncpa [#allocation4], 0
    %s9 = scalar_lea.sflag [#allocation4], 1
    %10 = vsyncpa %s9, 0
    loop: start=0, step=1, limit=4
    $region2: #{tpu_custom_call.1} parent=1 // loop_pre_header
      _
    $region3: #{tpu_custom_call.1} parent=1 // loop_header
      %s12 = sphi 0, %s16
      %p13 = scmp.ge.s32.totalorder %s12, 4
      %s22 = sphi 0, %s24
      %s25 = sphi 0, %s22
      %s26 = sphi 0, %s25
      %s42 = sphi 0, %s26
      %s46 = sphi 0, %s46
      %s48 = sphi 0, %s46
      %s49 = sphi 0, %s48
      %s63 = sphi 0, %s49
      %s69 = sphi 0, %s71
      %s72 = sphi 0, %s69
      %s73 = sphi 0, %s72
      %s89 = sphi 0, %s73
    $region4: #{tpu_custom_call.1} parent=1 // loop_header_branch
      %15 = sbr.rel (%p13) target = $region8
    $region5: #{tpu_custom_call.1} parent=1 // loop_body
      %s17 = ssub.s32 %s12, 1
      %s18 = ssub.s32 %s12, 2
      %s19 = sadd.s32 %s12, 1
      %s20 = ssub.s32 %s12, %s19
      %p21 = scmp.eq.s32.totalorder %s20, 0
      %s23 = sadd.s32 %s22, 1
      %s24 = scalar_select %p21, %s22, %s23
      %p27 = pneg %p21
      %p28 = scmp.eq.s32.totalorder %s12, 1
      %p29 = por %p27, %p28
      %p30 = scmp.ne.s32.totalorder %s22, %s25
      %p31 = scmp.eq.s32.totalorder %s12, 0
      %p32 = por %p30, %p31
      %p33 = scmp.ne.s32.totalorder %s22, %s25
      %p34 = scmp.eq.s32.totalorder %s17, 1
      %p35 = por %p33, %p34
      %p36 = scmp.ne.s32.totalorder %s25, %s26
      %p37 = scmp.eq.s32.totalorder %s17, 0
      %p38 = por %p36, %p37
      %p39 = scmp.ne.s32.totalorder %s25, %s26
      %p40 = scmp.eq.s32.totalorder %s18, 1
      %p41 = por %p39, %p40
      %p43 = scmp.ne.s32.totalorder %s26, %s42
      %p44 = scmp.eq.s32.totalorder %s18, 0
      %p45 = por %p43, %p44
      %s47 = sadd.s32 %s46, 1
      %p50 = scmp.eq.s32.totalorder %s12, 1
      %p51 = scmp.ne.s32.totalorder %s46, %s48
      %p52 = scmp.eq.s32.totalorder %s12, 0
      %p53 = por %p51, %p52
      %p54 = scmp.ne.s32.totalorder %s46, %s48
      %p55 = scmp.eq.s32.totalorder %s17, 1
      %p56 = por %p54, %p55
      %p57 = scmp.ne.s32.totalorder %s48, %s49
      %p58 = scmp.eq.s32.totalorder %s17, 0
      %p59 = por %p57, %p58
      %p60 = scmp.ne.s32.totalorder %s48, %s49
      %p61 = scmp.eq.s32.totalorder %s18, 1
      %p62 = por %p60, %p61
      %p64 = scmp.ne.s32.totalorder %s49, %s63
      %p65 = scmp.eq.s32.totalorder %s18, 0
      %p66 = por %p64, %p65
      %s67 = ssub.s32 %s12, %s19
      %p68 = scmp.eq.s32.totalorder %s67, 0
      %s70 = sadd.s32 %s69, 1
      %s71 = scalar_select %p68, %s69, %s70
      %p74 = pneg %p68
      %p75 = scmp.eq.s32.totalorder %s12, 1
      %p76 = por %p74, %p75
      %p77 = scmp.ne.s32.totalorder %s69, %s72
      %p78 = scmp.eq.s32.totalorder %s12, 0
      %p79 = por %p77, %p78
      %p80 = scmp.ne.s32.totalorder %s69, %s72
      %p81 = scmp.eq.s32.totalorder %s17, 1
      %p82 = por %p80, %p81
      %p83 = scmp.ne.s32.totalorder %s72, %s73
      %p84 = scmp.eq.s32.totalorder %s17, 0
      %p85 = por %p83, %p84
      %p86 = scmp.ne.s32.totalorder %s72, %s73
      %p87 = scmp.eq.s32.totalorder %s18, 1
      %p88 = por %p86, %p87
      %p90 = scmp.ne.s32.totalorder %s73, %s89
      %p91 = scmp.eq.s32.totalorder %s18, 0
      %p92 = por %p90, %p91
      %p93 = scmp.le.s32.totalorder 1, %s12
      %p94 = scmp.lt.s32.totalorder %s12, 3
      %p95 = pnand %p93, %p94
      %p96 = pneg %p95
      // Predicated region
      $region9: #{tpu_custom_call.1} parent=5 // pred_check
        _
      $region10: #{tpu_custom_call.1} parent=5 // pred_check_branch
        %98 = sbr.rel (%p95) target = $region12
      $region11: #{tpu_custom_call.1} parent=5 // pred_region
        %s99 = ssub.s32 %s12, 1
        // Predicated region
        $region13: #{tpu_custom_call.1} parent=11 // pred_check
          %p100 = pneg %p59
        $region14: #{tpu_custom_call.1} parent=11 // pred_check_branch
          %102 = sbr.rel (%p100) target = $region16
        $region15: #{tpu_custom_call.1} parent=11 // pred_region
          %s104 = ssub.s32 512, 512
          %105 = vsyncadd [#allocation3], %s104
          %s106 = sshll.u32 [#allocation2], 4
          %s107 = int_to_ptr.vmem [resolvable:$true] %s106
          %112 = dma.hbm_to_vmem [thread:$0]  %s1, 512, %s107, [#allocation3], 128, 128, 8
        $region16: #{tpu_custom_call.1} parent=11 // pred_fallthru
          _
      $region12: #{tpu_custom_call.1} parent=5 // pred_fallthru
        _
      %p113 = scmp.lt.s32.totalorder %s12, 2
      // Predicated region
      $region17: #{tpu_custom_call.1} parent=5 // pred_check
        %p114 = pneg %p113
      $region18: #{tpu_custom_call.1} parent=5 // pred_check_branch
        %116 = sbr.rel (%p114) target = $region20
      $region19: #{tpu_custom_call.1} parent=5 // pred_region
        // Predicated region
        $region21: #{tpu_custom_call.1} parent=19 // pred_check
          %p117 = pneg %p32
        $region22: #{tpu_custom_call.1} parent=19 // pred_check_branch
          %119 = sbr.rel (%p117) target = $region24
        $region23: #{tpu_custom_call.1} parent=19 // pred_region
          %p120 = scmp.lt.s32.totalorder %s12, 1
          %s121 = scalar_select %p120, %s12, 1
          %s122 = smul.addr %s121, 8
          %s123 = scalar_lea.vmem %s0, %s122
        $region24: #{tpu_custom_call.1} parent=19 // pred_fallthru
          _
      $region20: #{tpu_custom_call.1} parent=5 // pred_fallthru
        _
      %p124 = scmp.le.s32.totalorder 1, %s12
      %p125 = scmp.lt.s32.totalorder %s12, 3
      %p126 = pnand %p124, %p125
      %p127 = pneg %p126
      // Predicated region
      $region25: #{tpu_custom_call.1} parent=5 // pred_check
        _
      $region26: #{tpu_custom_call.1} parent=5 // pred_check_branch
        %129 = sbr.rel (%p126) target = $region28
      $region27: #{tpu_custom_call.1} parent=5 // pred_region
        %s130 = ssub.s32 %s12, 1
        // Predicated region
        $region29: #{tpu_custom_call.1} parent=27 // pred_check
          %p131 = pneg %p59
        $region30: #{tpu_custom_call.1} parent=27 // pred_check_branch
          %133 = sbr.rel (%p131) target = $region32
        $region31: #{tpu_custom_call.1} parent=27 // pred_region
          %134 = dma.done [#allocation3], 512
        $region32: #{tpu_custom_call.1} parent=27 // pred_fallthru
          _
        %p135 = scmp.lt.s32.totalorder %s17, 1
        %s136 = scalar_select %p135, %s17, 1
        %s137 = smul.addr %s136, 8
        %s138 = scalar_lea.vmem %s0, %s137
        %p139 = pneg %p38
        %p140 = pneg %p35
        %p141 = pneg %p59
        %p142 = pneg %p56
        %p143 = pneg %p85
        %p144 = pneg %p82
        %s145 = sand.u32 %s72, 1
        %s146 = scalar_lea.sflag [#allocation4], %s145
        %s147 = sand.u32 %s72, 1
        %s148 = smul.addr %s147, 8
        %s149 = scalar_lea.vmem [#allocation5], %s148
        %p150 = scmp.lt.s32.totalorder %s17, 1
        %s151 = scalar_select %p150, %s17, 1
        %s152 = smul.addr %s151, 8
        %s153 = scalar_lea.vmem %s0, %s152
        %v154 = vld [vmem:[%s153] sm:$0xff]
        %v155 = vlaneseq
        %v156 = vand.u32 %v155, 127
        %157 = vset.pattern.permute.xlu0 0
        %158 = vperm.xlu0 %157, %v154
        %v159 = vpop.permute.xlu0 %158
        %vm160 = vcmp.eq.s32.totalorder %v156, %v159
        %vm161 = vcmp.ne.s32.totalorder %v154, 0
        %v162 = vsel %vm161, 1, 0
        %163 = vset.pattern.permute.xlu0 0
        %164 = vperm.xlu0 %163, %v162
        %v165 = vpop.permute.xlu0 %164
        %vm166 = vcmp.eq.s32.totalorder %v165, 1
        %vm167 = vmand %vm160, %vm166
        %v168 = vsel %vm167, 1, 0
        %v169 = vcvt.s32.f32 %v168
        %v170 = vld [vmem:[#allocation2] sm:$0xff]
        %v171 = vld [vmem:[#allocation2 + $0x8] sm:$0xff]
        %v172 = vld [vmem:[#allocation2 + $0x10] sm:$0xff]
        %v173 = vld [vmem:[#allocation2 + $0x18] sm:$0xff]
        %vm174 = vcmask 261120
        %v176 = vsel %vm174, %v169, 0
        %178 = vmatprep.subr.mxu0 0.0
        %179 = vmatpush1.msra.mxu0 %v170
        %180 = vmatprep.subr.mxu0 0.0
        %181 = vmatpush1.msra.mxu0 %v171
        %182 = vmatprep.subr.mxu0 0.0
        %183 = vmatpush1.msra.mxu0 %v172
        %184 = vmatprep.subr.mxu0 0.0
        %185 = vmatpush1.msra.mxu0 %v173
        %186 = vmatprep.subr.mxu0 0.0
        %187 = vmatpush1.msra.mxu0 0.0
        %188 = vmatprep.subr.mxu0 0.0
        %189 = vmatpush1.msra.mxu0 0.0
        %190 = vmatprep.subr.mxu0 0.0
        %191 = vmatpush1.msra.mxu0 0.0
        %192 = vmatprep.subr.mxu0 0.0
        %193 = vmatpush1.msra.mxu0 0.0
        %194 = vmatprep.subr.mxu0 0.0
        %195 = vmatpush1.msra.mxu0 0.0
        %196 = vmatprep.subr.mxu0 0.0
        %197 = vmatpush1.msra.mxu0 0.0
        %198 = vmatprep.subr.mxu0 0.0
        %199 = vmatpush1.msra.mxu0 0.0
        %200 = vmatprep.subr.mxu0 0.0
        %201 = vmatpush1.msra.mxu0 0.0
        %202 = vmatprep.subr.mxu0 0.0
        %203 = vmatpush1.msra.mxu0 0.0
        %204 = vmatprep.subr.mxu0 0.0
        %205 = vmatpush1.msra.mxu0 0.0
        %206 = vmatprep.subr.mxu0 0.0
        %207 = vmatpush1.msra.mxu0 0.0
        %208 = vmatprep.subr.mxu0 0.0
        %209 = vmatpush1.msra.mxu0 0.0
        %210 = vmatprep.subr.mxu0 0.0
        %211 = vmatpush1.msra.mxu0 0.0
        %212 = vmatprep.subr.mxu0 0.0
        %213 = vmatpush1.msra.mxu0 0.0
        %214 = vmatprep.subr.mxu0 0.0
        %215 = vmatpush1.msra.mxu0 0.0
        %216 = vmatprep.subr.mxu0 0.0
        %217 = vmatpush1.msra.mxu0 0.0
        %218 = vmatprep.subr.mxu0 0.0
        %219 = vmatpush1.msra.mxu0 0.0
        %220 = vmatprep.subr.mxu0 0.0
        %221 = vmatpush1.msra.mxu0 0.0
        %222 = vmatprep.subr.mxu0 0.0
        %223 = vmatpush1.msra.mxu0 0.0
        %224 = vmatprep.subr.mxu0 0.0
        %225 = vmatpush1.msra.mxu0 0.0
        %226 = vmatprep.subr.mxu0 0.0
        %227 = vmatpush1.msra.mxu0 0.0
        %228 = vmatprep.subr.mxu0 0.0
        %229 = vmatpush1.msra.mxu0 0.0
        %230 = vmatprep.subr.mxu0 0.0
        %231 = vmatpush1.msra.mxu0 0.0
        %232 = vmatprep.subr.mxu0 0.0
        %233 = vmatpush1.msra.mxu0 0.0
        %234 = vmatprep.subr.mxu0 0.0
        %235 = vmatpush1.msra.mxu0 0.0
        %236 = vmatprep.subr.mxu0 0.0
        %237 = vmatpush1.msra.mxu0 0.0
        %238 = vmatprep.subr.mxu0 0.0
        %239 = vmatpush1.msra.mxu0 0.0
        %240 = vmatprep.subr.mxu0 0.0
        %241 = vmatpush1.msra.mxu0 0.0
        %242 = vmatprep.mubr.f32.mxu0 0.0
        %243 = vmatmul.mubr.f32.gmra.mrb[0].mxu0 %v176
        %v244 = vpop.f32.mrb[0].mxu0
        %v245 = vadd.f32 0.0, %v244
        %v246 = vpop.f32.mrb[0].mxu0
        %247 = vdwg.mxu0
        %248 = vst [vmem:[%s149] sm:$0xff] %v245
        %s249 = sand.u32 %s72, 1
        %s250 = scalar_lea.sflag [#allocation4], %s249
        %s251 = sand.u32 %s72, 1
        %s252 = smul.addr %s251, 8
        %s253 = scalar_lea.vmem [#allocation5], %s252
        // Predicated region
        $region33: #{tpu_custom_call.1} parent=27 // pred_check
          %p254 = pneg %p82
        $region34: #{tpu_custom_call.1} parent=27 // pred_check_branch
          %256 = sbr.rel (%p254) target = $region36
        $region35: #{tpu_custom_call.1} parent=27 // pred_region
          %s258 = ssub.s32 128, 128
          %259 = vsyncadd %s250, %s258
          %s260 = smul.addr %s17, 128
          %s261 = scalar_lea.hbm %s2, %s260
          %s263 = sshll.u32 %s253, 4
          %s264 = int_to_ptr.vmem [resolvable:$true] %s263
          %266 = dma.vmem_to_hbm [thread:$0]  %s264, 128, %s261, %s250
        $region36: #{tpu_custom_call.1} parent=27 // pred_fallthru
          _
      $region28: #{tpu_custom_call.1} parent=5 // pred_fallthru
        _
      %p267 = scmp.le.s32.totalorder 2, %s12
      // Predicated region
      $region37: #{tpu_custom_call.1} parent=5 // pred_check
        %p268 = pneg %p267
      $region38: #{tpu_custom_call.1} parent=5 // pred_check_branch
        %270 = sbr.rel (%p268) target = $region40
      $region39: #{tpu_custom_call.1} parent=5 // pred_region
        %s271 = ssub.s32 %s12, 2
        // Predicated region
        $region41: #{tpu_custom_call.1} parent=39 // pred_check
          %p272 = pneg %p88
        $region42: #{tpu_custom_call.1} parent=39 // pred_check_branch
          %274 = sbr.rel (%p272) target = $region44
        $region43: #{tpu_custom_call.1} parent=39 // pred_region
          %s275 = sand.u32 %s73, 1
          %s276 = scalar_lea.sflag [#allocation4], %s275
          %s277 = sand.u32 %s73, 1
          %s278 = smul.addr %s277, 8
          %s279 = scalar_lea.vmem [#allocation5], %s278
          %280 = dma.done %s276, 128
        $region44: #{tpu_custom_call.1} parent=39 // pred_fallthru
          _
      $region40: #{tpu_custom_call.1} parent=5 // pred_fallthru
        _
    $region6: #{tpu_custom_call.1} parent=1 // loop_footer
      %s16 = sadd.s32 1, %s12
    $region7: #{tpu_custom_call.1} parent=1 // loop_footer_branch
      %11 = sbr.rel target = $region3
    $region8: #{tpu_custom_call.1} parent=1 // loop_exit
      _
    %281 = vsyncpa [#allocation3], 1
    %s282 = scalar_lea.sflag [#allocation3], 1
    %283 = vsyncpa %s282, 1
    %284 = vsyncpa [#allocation4], 1
    %s285 = scalar_lea.sflag [#allocation4], 1
    %286 = vsyncpa %s285, 1

</llo_original>
